<compile_context>
chip_gen: v7x
topology: tpu7x:2x2x1
jax: 0.10.0
libtpu: 0.0.40
codegen_flags: <defaults>
</compile_context>

<pallas_src>
import jax
import jax.numpy as jnp
import numpy as np
from jax.experimental import pallas as pl
from jax.experimental.pallas import tpu as pltpu


# -----------------------------------------------------------------------------
# Host-side parameter construction (mirrors PriorSmoothLogLoss.__init__,
# without the matplotlib plotting).
# -----------------------------------------------------------------------------
def make_prior_smooth_log_params(n_max: int, l_0: float = 1.0,
                                 k_1: float = 0.5, k_2: float = 0.5,
                                 S_1=None, S_2=None, w_clim: float = 1.0):
    """All static vectors the kernel needs, pre-reduced and zero-padded on host."""
    s_l = np.log(np.arange(n_max + 1) + l_0)               # (N,) float64
    a = list(s_l)
    grid_cell_size = (np.array(a + [a[-1], a[-1]])
                      - np.array([a[0], a[0]] + a))[1:-1] / 2.0   # (N,)

    log_max = s_l.max()
    radius = log_max / np.pi
    if S_1 is None:
        S_1 = log_max * k_1
    if S_2 is None:
        S_2 = log_max * k_2
    w_1 = float((radius * S_1) ** 2)
    w_2 = float((radius * S_2) ** 4)

    n = n_max + 1
    ds1 = s_l[1:] - s_l[:-1]           # (N-1,)  spacing for 1st derivative
    ds2 = s_l[1:-1] - s_l[:-2]         # (N-2,)  spacing for 2nd derivative (== ds1[:-1])

    # Weights with 0.5*w_* and the per-term mean counts folded in (the global
    # 1/B factor is applied in the wrapper so params do not depend on batch).
    wc = 0.5 * w_clim * grid_cell_size / n       # (N,)
    w1 = 0.5 * w_1 * ds1 / (n - 1)               # (N-1,)
    w2 = 0.5 * w_2 * ds1[:-1] / (n - 2)          # (N-2,)

    def padded_col(v, pad):   # zero-pad to N rows -> roll "wrap" rows contribute 0
        v = np.concatenate([np.asarray(v, np.float64), np.zeros(pad)])
        return jnp.asarray(v, jnp.float32).reshape(-1, 1)

    return {
        "wc": padded_col(wc, 0),           # (N,1)
        "inv_ds1": padded_col(1.0 / ds1, 1),
        "w1": padded_col(w1, 1),
        "inv_ds2": padded_col(1.0 / ds2, 2),
        "w2": padded_col(w2, 2),
        # kept for the pure-JAX reference
        "s_l": jnp.asarray(s_l, jnp.float32),
        "d_l": jnp.asarray(grid_cell_size, jnp.float32),
        "w_1": w_1, "w_2": w_2, "w_clim": float(w_clim),
    }


# -----------------------------------------------------------------------------
# One-time probe: sublane roll support + semantics on the current backend.
# -----------------------------------------------------------------------------
_ROLL_OK = {}


def _sublane_roll_ok(n_rows: int) -> bool:
    """True iff pltpu.roll(x, n_rows-1, axis=0) lowers here and maps row i <- row i+1
    (jnp.roll semantics).  Otherwise the wrapper uses the sliced-diff kernel."""
    if n_rows not in _ROLL_OK:
        def probe(x_ref, o_ref):
            o_ref[...] = pltpu.roll(x_ref[...], n_rows - 1, axis=0)
        try:
            x = jax.lax.broadcasted_iota(jnp.float32, (n_rows, 128), 0)
            out = pl.pallas_call(
                probe,
                out_shape=jax.ShapeDtypeStruct((n_rows, 128), jnp.float32))(x)
            _ROLL_OK[n_rows] = bool(
                jnp.array_equal(out, jnp.roll(x, n_rows - 1, axis=0)))
        except Exception:
            _ROLL_OK[n_rows] = False
    return _ROLL_OK[n_rows]


# -----------------------------------------------------------------------------
# Pallas kernels
# -----------------------------------------------------------------------------
def _make_kernel(n: int, use_roll: bool):
    def kernel(x_ref, t_ref, wc_ref, i1_ref, w1_ref, i2_ref, w2_ref, out_ref):
        # (N, TB) tile; upcast in-register so bf16 stays bf16 on the HBM wire.
        x = x_ref[...].astype(jnp.float32)
        t = t_ref[...].astype(jnp.float32)
        # Single EUP log per element pair (instead of log(x) - log(t)).
        err = jnp.log(x * pl.reciprocal(t))                     # (N, TB)

        if use_roll:
            # Sublane rotate on the XLU; row i picks up row i+1 (wrap row killed
            # by the zero-padded weights / reciprocals).
            e_up = pltpu.roll(err, n - 1, axis=0)
            der1 = (e_up - err) * i1_ref[...]                   # rows 0..N-2 valid
            d_up = pltpu.roll(der1, n - 1, axis=0)
            der2 = (d_up - der1) * i2_ref[...]                  # rows 0..N-3 valid
            acc = (wc_ref[...] * err * err
                   + w1_ref[...] * der1 * der1
                   + w2_ref[...] * der2 * der2)
            out_ref[...] = jnp.sum(acc, axis=0, keepdims=True)  # ONE sublane reduce
        else:
            # Fallback: sliced diffs (always-correct path).
            i1 = i1_ref[...][: n - 1]
            w1 = w1_ref[...][: n - 1]
            i2 = i2_ref[...][: n - 2]
            w2 = w2_ref[...][: n - 2]
            der1 = (err[1:, :] - err[:-1, :]) * i1
            der2 = (der1[1:, :] - der1[:-1, :]) * i2
            out_ref[...] = (jnp.sum(wc_ref[...] * err * err, axis=0, keepdims=True)
                            + jnp.sum(w1 * der1 * der1, axis=0, keepdims=True)
                            + jnp.sum(w2 * der2 * der2, axis=0, keepdims=True))
    return kernel


# -----------------------------------------------------------------------------
# Batch-tile (lane) selection
# -----------------------------------------------------------------------------
def _choose_tile_b(b: int, n_rows: int, itemsize: int) -> int:
    """~1 MiB per streamed input block, >=4 grid steps when possible, capped at
    16384 lanes (fits v5e's 16 MiB scoped-VMEM default and v7x's 64 MiB VMEM)."""
    if b < 4 * 128:
        return b                                   # tiny batch: one full-array tile
    by_bytes = (1 << 20) // (n_rows * itemsize)    # ~1 MiB streamed block
    by_grid = b // 4                               # >= 4 grid steps (v7x: 2 TCs x 2 bufs)
    tile = max(128, min(16384, by_bytes, by_grid))
    return (tile // 128) * 128


# -----------------------------------------------------------------------------
# Wrapper
# -----------------------------------------------------------------------------
def prior_smooth_log_loss(inputs_nb, targets_nb, params, *, tile_b=None,
                          rand_scale=1.0):
    """Pallas implementation of PriorSmoothLogLoss.forward (draw=False).

    inputs_nb / targets_nb: (N, B) — spectral bins on sublanes, batch on lanes.
    Native dtype (f32 or bf16) streams over HBM and is upcast inside the kernel.
    """
    n, b = inputs_nb.shape
    assert targets_nb.shape == (n, b)
    assert n >= 3, "need at least 3 spectral bins for the 2nd derivative"

    wc, i1, w1, i2, w2 = (params["wc"], params["inv_ds1"], params["w1"],
                          params["inv_ds2"], params["w2"])
    assert wc.shape == (n, 1) and i1.shape == (n, 1)

    itemsize = inputs_nb.dtype.itemsize
    if tile_b is None:
        tile_b = _choose_tile_b(b, n, itemsize)
    if tile_b >= b:
        tile_b = b                                  # single tile: block == full array dims
        pb = b
    else:
        tile_b = max(128, (tile_b // 128) * 128)    # lane-aligned
        pb = pl.cdiv(b, tile_b) * tile_b

    x, t = inputs_nb, targets_nb
    if pb != b:
        # Pad batch with ones: log(1 * 1/1) = 0 -> padded columns contribute 0.
        pad = ((0, 0), (0, pb - b))
        x = jnp.pad(x, pad, constant_values=1)
        t = jnp.pad(t, pad, constant_values=1)

    grid = (pb // tile_b,)
    kernel = _make_kernel(n, _sublane_roll_ok(n))

    partials = pl.pallas_call(
        kernel,
        out_shape=jax.ShapeDtypeStruct((1, pb), jnp.float32),
        grid_spec=pltpu.PrefetchScalarGridSpec(
            num_scalar_prefetch=0,
            grid=grid,
            in_specs=[
                pl.BlockSpec((n, tile_b), lambda i: (0, i)),   # inputs  (streamed)
                pl.BlockSpec((n, tile_b), lambda i: (0, i)),   # targets (streamed)
                pl.BlockSpec((n, 1), lambda i: (0, 0)),        # wc      (resident)
                pl.BlockSpec((n, 1), lambda i: (0, 0)),        # 1/ds1   (resident)
                pl.BlockSpec((n, 1), lambda i: (0, 0)),        # w1      (resident)
                pl.BlockSpec((n, 1), lambda i: (0, 0)),        # 1/ds2   (resident)
                pl.BlockSpec((n, 1), lambda i: (0, 0)),        # w2      (resident)
            ],
            out_specs=pl.BlockSpec((1, tile_b), lambda i: (0, i)),
        ),
        compiler_params=pltpu.CompilerParams(
            dimension_semantics=("parallel",),      # v7x: shard batch tiles over 2 TCs
            vmem_limit_bytes=32 * 1024 * 1024,      # headroom above v5e's 16 MiB default
        ),
    )(x, t, wc, i1, w1, i2, w2)

    loss = jnp.sum(partials) / b     # tiny (1, B) reduce + global 1/B in XLA

    # TODO(synk): PriorSmoothLogLoss.forward multiplies by np.random.rand()
    # (host-side NumPy RNG). Kept deterministic here; pass rand_scale to match.
    return loss * rand_scale


# -----------------------------------------------------------------------------
# Pure-JAX reference (faithful to the PyTorch forward, deterministic factor = 1)
# -----------------------------------------------------------------------------
def prior_smooth_log_loss_ref(inputs_bn, targets_bn, s_l, d_l, w_1, w_2,
                              w_clim=1.0):
    err = jnp.log(inputs_bn) - jnp.log(targets_bn)            # (B, N)
    loss_clim = 0.5 * w_clim * err ** 2 * d_l
    ds1 = s_l[1:] - s_l[:-1]
    der1 = (err[:, 1:] - err[:, :-1]) / ds1
    ds2 = s_l[1:-1] - s_l[:-2]
    der2 = (der1[:, 1:] - der1[:, :-1]) / ds2
    loss_1 = 0.5 * w_1 * der1 ** 2 * ds1
    loss_2 = 0.5 * w_2 * der2 ** 2 * ds1[:-1]
    return loss_clim.mean() + loss_1.mean() + loss_2.mean()


if __name__ == "__main__":
    # Module config: n_max=15 -> N = 16 wavenumber bins.
    n_max = 15
    n = n_max + 1
    params = make_prior_smooth_log_params(n_max, l_0=1.0, k_1=0.5, k_2=0.5)

    key = jax.random.PRNGKey(0)
    k1, k2, k3, k4 = jax.random.split(key, 4)

    # --- tiny batch (like the module's toy usage): single full-array tile -----
    x2 = jax.random.uniform(k1, (n, 2), jnp.float32, minval=0.5, maxval=2.0)
    t2 = jax.random.uniform(k2, (n, 2), jnp.float32, minval=0.5, maxval=2.0)
    loss2 = jax.block_until_ready(prior_smooth_log_loss(x2, t2, params))
    ref2 = jax.block_until_ready(
        prior_smooth_log_loss_ref(x2.T, t2.T, params["s_l"], params["d_l"],
                                  params["w_1"], params["w_2"], params["w_clim"]))
    np.testing.assert_allclose(np.asarray(loss2), np.asarray(ref2),
                               rtol=1e-4, atol=1e-6)

    # --- gridded path: B=1000 (not a multiple of 128) -> auto tile, >=4 grid
    #     steps, batch padded with ones -------------------------------------
    b = 1000
    xb = jax.random.uniform(k3, (n, b), jnp.float32, minval=0.5, maxval=2.0)
    tb = jax.random.uniform(k4, (n, b), jnp.float32, minval=0.5, maxval=2.0)
    lossb = jax.block_until_ready(prior_smooth_log_loss(xb, tb, params))
    refb = jax.block_until_ready(
        prior_smooth_log_loss_ref(xb.T, tb.T, params["s_l"], params["d_l"],
                                  params["w_1"], params["w_2"], params["w_clim"]))
    np.testing.assert_allclose(np.asarray(lossb), np.asarray(refb),
                               rtol=1e-4, atol=1e-6)

    # --- bf16 streaming path (halves HBM wire traffic); reference on the same
    #     bf16-rounded values ----------------------------------------------
    xh, th = xb.astype(jnp.bfloat16), tb.astype(jnp.bfloat16)
    lossh = jax.block_until_ready(prior_smooth_log_loss(xh, th, params))
    refh = jax.block_until_ready(
        prior_smooth_log_loss_ref(xh.astype(jnp.float32).T,
                                  th.astype(jnp.float32).T,
                                  params["s_l"], params["d_l"],
                                  params["w_1"], params["w_2"], params["w_clim"]))
    np.testing.assert_allclose(np.asarray(lossh), np.asarray(refh),
                               rtol=1e-3, atol=1e-5)

    print("KERNEL_OK")
</pallas_src>

<mosaic_0001>
module attributes {stable_mosaic.version = 11 : i64} {
  func.func @probe(%arg0: memref<16x128xf32, #tpu.memory_space<vmem>>, %arg1: memref<16x128xf32, #tpu.memory_space<vmem>>) attributes {dimension_semantics = [], scalar_prefetch = 0 : i64, scratch_operands = 0 : i64, tpu.core_type = #tpu.core_type<tc>} {
    %c0 = arith.constant 0 : index
    %c0_0 = arith.constant 0 : index
    %0 = vector.load %arg0[%c0, %c0_0] : memref<16x128xf32, #tpu.memory_space<vmem>>, vector<16x128xf32>
    %c15_i32 = arith.constant 15 : i32
    %1 = tpu.dynamic_rotate %0 by %c15_i32 dim 0 : vector<16x128xf32>, i32 -> vector<16x128xf32>
    %c0_1 = arith.constant 0 : index
    %c0_2 = arith.constant 0 : index
    %2 = vector.load %arg1[%c0_1, %c0_2] : memref<16x128xf32, #tpu.memory_space<vmem>>, vector<16x128xf32>
    tpu.vector_store %arg1[%c0_1, %c0_2], %1 {strides = array<i32>} : memref<16x128xf32, #tpu.memory_space<vmem>>, vector<16x128xf32>,
    return
  }
}

module attributes {stable_mosaic.version = 11 : i64} {
  func.func @kernel(%arg0: i32, %arg1: memref<16x2xf32, #tpu.memory_space<vmem>>, %arg2: memref<16x2xf32, #tpu.memory_space<vmem>>, %arg3: memref<16x1xf32, #tpu.memory_space<vmem>>, %arg4: memref<16x1xf32, #tpu.memory_space<vmem>>, %arg5: memref<16x1xf32, #tpu.memory_space<vmem>>, %arg6: memref<16x1xf32, #tpu.memory_space<vmem>>, %arg7: memref<16x1xf32, #tpu.memory_space<vmem>>, %arg8: memref<1x2xf32, #tpu.memory_space<vmem>>) attributes {dimension_semantics = [#tpu.dimension_semantics<parallel>], iteration_bounds = array<i64: 1>, scalar_prefetch = 0 : i64, scratch_operands = 0 : i64, tpu.core_type = #tpu.core_type<tc>, window_params = [{transform_indices = @transform_0, window_bounds = array<i64: 16, 2>}, {transform_indices = @transform_1, window_bounds = array<i64: 16, 2>}, {pipeline_mode = #tpu.pipeline_mode<synchronous>, transform_indices = @transform_2, window_bounds = array<i64: 16, 1>}, {pipeline_mode = #tpu.pipeline_mode<synchronous>, transform_indices = @transform_3, window_bounds = array<i64: 16, 1>}, {pipeline_mode = #tpu.pipeline_mode<synchronous>, transform_indices = @transform_4, window_bounds = array<i64: 16, 1>}, {pipeline_mode = #tpu.pipeline_mode<synchronous>, transform_indices = @transform_5, window_bounds = array<i64: 16, 1>}, {pipeline_mode = #tpu.pipeline_mode<synchronous>, transform_indices = @transform_6, window_bounds = array<i64: 16, 1>}, {transform_indices = @transform_7, window_bounds = array<i64: 1, 2>}]} {
    %c0 = arith.constant 0 : index
    %c0_0 = arith.constant 0 : index
    %0 = vector.load %arg1[%c0, %c0_0] : memref<16x2xf32, #tpu.memory_space<vmem>>, vector<16x2xf32>
    %c0_1 = arith.constant 0 : index
    %c0_2 = arith.constant 0 : index
    %1 = vector.load %arg2[%c0_1, %c0_2] : memref<16x2xf32, #tpu.memory_space<vmem>>, vector<16x2xf32>
    %2 = tpu.reciprocal %1 : vector<16x2xf32> -> vector<16x2xf32>
    %3 = arith.mulf %0, %2 : vector<16x2xf32>
    %4 = math.log %3 : vector<16x2xf32>
    %c0_3 = arith.constant 0 : index
    %c0_4 = arith.constant 0 : index
    %5 = vector.load %arg4[%c0_3, %c0_4] : memref<16x1xf32, #tpu.memory_space<vmem>>, vector<16x1xf32>
    %6 = vector.extract_strided_slice %5 {offsets = [0, 0], sizes = [15, 1], strides = [1, 1]} : vector<16x1xf32> to vector<15x1xf32>
    %c0_5 = arith.constant 0 : index
    %c0_6 = arith.constant 0 : index
    %7 = vector.load %arg5[%c0_5, %c0_6] : memref<16x1xf32, #tpu.memory_space<vmem>>, vector<16x1xf32>
    %8 = vector.extract_strided_slice %7 {offsets = [0, 0], sizes = [15, 1], strides = [1, 1]} : vector<16x1xf32> to vector<15x1xf32>
    %c0_7 = arith.constant 0 : index
    %c0_8 = arith.constant 0 : index
    %9 = vector.load %arg6[%c0_7, %c0_8] : memref<16x1xf32, #tpu.memory_space<vmem>>, vector<16x1xf32>
    %10 = vector.extract_strided_slice %9 {offsets = [0, 0], sizes = [14, 1], strides = [1, 1]} : vector<16x1xf32> to vector<14x1xf32>
    %c0_9 = arith.constant 0 : index
    %c0_10 = arith.constant 0 : index
    %11 = vector.load %arg7[%c0_9, %c0_10] : memref<16x1xf32, #tpu.memory_space<vmem>>, vector<16x1xf32>
    %12 = vector.extract_strided_slice %11 {offsets = [0, 0], sizes = [14, 1], strides = [1, 1]} : vector<16x1xf32> to vector<14x1xf32>
    %13 = vector.extract_strided_slice %4 {offsets = [1, 0], sizes = [15, 2], strides = [1, 1]} : vector<16x2xf32> to vector<15x2xf32>
    %14 = vector.extract_strided_slice %4 {offsets = [0, 0], sizes = [15, 2], strides = [1, 1]} : vector<16x2xf32> to vector<15x2xf32>
    %15 = arith.subf %13, %14 : vector<15x2xf32>
    %16 = vector.broadcast %6 : vector<15x1xf32> to vector<15x2xf32>
    %17 = arith.mulf %15, %16 : vector<15x2xf32>
    %18 = vector.extract_strided_slice %17 {offsets = [1, 0], sizes = [14, 2], strides = [1, 1]} : vector<15x2xf32> to vector<14x2xf32>
    %19 = vector.extract_strided_slice %17 {offsets = [0, 0], sizes = [14, 2], strides = [1, 1]} : vector<15x2xf32> to vector<14x2xf32>
    %20 = arith.subf %18, %19 : vector<14x2xf32>
    %21 = vector.broadcast %10 : vector<14x1xf32> to vector<14x2xf32>
    %22 = arith.mulf %20, %21 : vector<14x2xf32>
    %c0_11 = arith.constant 0 : index
    %c0_12 = arith.constant 0 : index
    %23 = vector.load %arg3[%c0_11, %c0_12] : memref<16x1xf32, #tpu.memory_space<vmem>>, vector<16x1xf32>
    %24 = vector.broadcast %23 : vector<16x1xf32> to vector<16x2xf32>
    %25 = arith.mulf %24, %4 : vector<16x2xf32>
    %26 = arith.mulf %25, %4 : vector<16x2xf32>
    %cst = arith.constant dense<0.000000e+00> : vector<2xf32>
    %27 = vector.multi_reduction <add>, %26, %cst [0] : vector<16x2xf32> to vector<2xf32>
    %28 = vector.shape_cast %27 : vector<2xf32> to vector<1x2xf32>
    %29 = vector.broadcast %8 : vector<15x1xf32> to vector<15x2xf32>
    %30 = arith.mulf %29, %17 : vector<15x2xf32>
    %31 = arith.mulf %30, %17 : vector<15x2xf32>
    %cst_13 = arith.constant dense<0.000000e+00> : vector<2xf32>
    %32 = vector.multi_reduction <add>, %31, %cst_13 [0] : vector<15x2xf32> to vector<2xf32>
    %33 = vector.shape_cast %32 : vector<2xf32> to vector<1x2xf32>
    %34 = arith.addf %28, %33 : vector<1x2xf32>
    %35 = vector.broadcast %12 : vector<14x1xf32> to vector<14x2xf32>
    %36 = arith.mulf %35, %22 : vector<14x2xf32>
    %37 = arith.mulf %36, %22 : vector<14x2xf32>
    %cst_14 = arith.constant dense<0.000000e+00> : vector<2xf32>
    %38 = vector.multi_reduction <add>, %37, %cst_14 [0] : vector<14x2xf32> to vector<2xf32>
    %39 = vector.shape_cast %38 : vector<2xf32> to vector<1x2xf32>
    %40 = arith.addf %34, %39 : vector<1x2xf32>
    %c0_15 = arith.constant 0 : index
    %c0_16 = arith.constant 0 : index
    %41 = vector.load %arg8[%c0_15, %c0_16] : memref<1x2xf32, #tpu.memory_space<vmem>>, vector<1x2xf32>
    tpu.vector_store %arg8[%c0_15, %c0_16], %40 {strides = array<i32>} : memref<1x2xf32, #tpu.memory_space<vmem>>, vector<1x2xf32>,
    return
  }
  func.func @transform_0(%arg0: i32) -> (i32, i32) {
    %c0_i32 = arith.constant 0 : i32
    %c0_i32_0 = arith.constant 0 : i32
    return %c0_i32, %arg0 : i32, i32
  }
  func.func @transform_1(%arg0: i32) -> (i32, i32) {
    %c0_i32 = arith.constant 0 : i32
    %c0_i32_0 = arith.constant 0 : i32
    return %c0_i32, %arg0 : i32, i32
  }
  func.func @transform_2(%arg0: i32) -> (i32, i32) {
    %c0_i32 = arith.constant 0 : i32
    %c0_i32_0 = arith.constant 0 : i32
    %c0_i32_1 = arith.constant 0 : i32
    return %c0_i32, %c0_i32_0 : i32, i32
  }
  func.func @transform_3(%arg0: i32) -> (i32, i32) {
    %c0_i32 = arith.constant 0 : i32
    %c0_i32_0 = arith.constant 0 : i32
    %c0_i32_1 = arith.constant 0 : i32
    return %c0_i32, %c0_i32_0 : i32, i32
  }
  func.func @transform_4(%arg0: i32) -> (i32, i32) {
    %c0_i32 = arith.constant 0 : i32
    %c0_i32_0 = arith.constant 0 : i32
    %c0_i32_1 = arith.constant 0 : i32
    return %c0_i32, %c0_i32_0 : i32, i32
  }
  func.func @transform_5(%arg0: i32) -> (i32, i32) {
    %c0_i32 = arith.constant 0 : i32
    %c0_i32_0 = arith.constant 0 : i32
    %c0_i32_1 = arith.constant 0 : i32
    return %c0_i32, %c0_i32_0 : i32, i32
  }
  func.func @transform_6(%arg0: i32) -> (i32, i32) {
    %c0_i32 = arith.constant 0 : i32
    %c0_i32_0 = arith.constant 0 : i32
    %c0_i32_1 = arith.constant 0 : i32
    return %c0_i32, %c0_i32_0 : i32, i32
  }
  func.func @transform_7(%arg0: i32) -> (i32, i32) {
    %c0_i32 = arith.constant 0 : i32
    %c0_i32_0 = arith.constant 0 : i32
    return %c0_i32, %arg0 : i32, i32
  }
}

</mosaic_0001>

<llo_original>
// kernel: tpu_custom_call.1
$region0: #{tpu_custom_call.1}
  #allocation0 [shape = 'u32[]', space=smem, size = 0x4, offset = 0x4, fixed_abs, tag = 'smem constant byte address 0x4 - core index']
  #allocation1 [shape = 'u32[144,128]{1,0:T(1,128)}', space=vmem, size = 0x12000, scoped, tag = 'internal scratch']
  %s0 = inlined_call_operand.hbm [shape: f32[16,128], index: 0, kind: input, shape index: {}]
  %s1 = inlined_call_operand.hbm [shape: f32[16,128], index: 1, kind: output, shape index: {}]
  %s2 = sld [smem:[#allocation0]]
  $region18: #{tpu_custom_call.1} parent=0
    _
  %s4 = ssub.s32 1, %s2
  %s5 = scalar_select 0, %s4, %s2
  $region1: #{tpu_custom_call.1} parent=0
    #allocation2 [shape = 'u8[8192]{0}', space=vmem, size = 0x2000, scoped, tag = 'input window, operand 0, single buffered']
    #allocation3 [shape = 's32[1]{0}', space=sflag, size = 0x4, scoped, tag = 'scoped memory for tpu_custom_call.1']
    #allocation4 [shape = 's32[1]{0}', space=sflag, size = 0x4, scoped, tag = 'scoped memory for tpu_custom_call.1']
    #allocation5 [shape = 'u8[8192]{0}', space=vmem, size = 0x2000, scoped, tag = 'output window, operand 0, single buffered']
    %6 = vsyncpa [#allocation3], 0
    %7 = vsyncpa [#allocation4], 0
    // Predicated region
    $region2: #{tpu_custom_call.1} parent=1 // pred_check
      _
    $region3: #{tpu_custom_call.1} parent=1 // pred_check_branch
      %9 = sbr.rel (0) target = $region5
    $region4: #{tpu_custom_call.1} parent=1 // pred_region
      %s11 = ssub.s32 256, 256
      %12 = vsyncadd [#allocation3], %s11
      %s13 = sshll.u32 [#allocation2], 4
      %s14 = int_to_ptr.vmem [resolvable:$true] %s13
      %19 = dma.hbm_to_vmem [thread:$0]  %s0, 256, %s14, [#allocation3], 128, 128, 8
    $region5: #{tpu_custom_call.1} parent=1 // pred_fallthru
      _
    // Predicated region
    $region6: #{tpu_custom_call.1} parent=1 // pred_check
      _
    $region7: #{tpu_custom_call.1} parent=1 // pred_check_branch
      %21 = sbr.rel (0) target = $region9
    $region8: #{tpu_custom_call.1} parent=1 // pred_region
      %22 = dma.done [#allocation3], 256
    $region9: #{tpu_custom_call.1} parent=1 // pred_fallthru
      _
    %v23 = vld [vmem:[#allocation2] sm:$0xff]
    %v24 = vld [vmem:[#allocation2 + $0x8] sm:$0xff]
    %v25 = vrot.slane %v23, 1
    %v26 = vrot.slane %v24, 1
    %v27 = vlaneseq
    %v28 = vshrl.u32 %v27, 7
    %vm29 = vcmp.lt.s32.totalorder %v28, 7
    %v30 = vsel %vm29, %v25, %v26
    %v31 = vsel %vm29, %v26, %v25
    %32 = vst [vmem:[#allocation5] sm:$0xff] %v30
    %33 = vst [vmem:[#allocation5 + $0x8] sm:$0xff] %v31
    // Predicated region
    $region10: #{tpu_custom_call.1} parent=1 // pred_check
      _
    $region11: #{tpu_custom_call.1} parent=1 // pred_check_branch
      %35 = sbr.rel (0) target = $region13
    $region12: #{tpu_custom_call.1} parent=1 // pred_region
      %s37 = ssub.s32 256, 256
      %38 = vsyncadd [#allocation4], %s37
      %s39 = sshll.u32 [#allocation5], 4
      %s40 = int_to_ptr.vmem [resolvable:$true] %s39
      %45 = dma.vmem_to_hbm [thread:$0]  %s40, 256, %s1, [#allocation4], 128, 128, 8
    $region13: #{tpu_custom_call.1} parent=1 // pred_fallthru
      _
    // Predicated region
    $region14: #{tpu_custom_call.1} parent=1 // pred_check
      _
    $region15: #{tpu_custom_call.1} parent=1 // pred_check_branch
      %47 = sbr.rel (0) target = $region17
    $region16: #{tpu_custom_call.1} parent=1 // pred_region
      %48 = dma.done [#allocation4], 256
    $region17: #{tpu_custom_call.1} parent=1 // pred_fallthru
      _
    %49 = vsyncpa [#allocation3], 1
    %50 = vsyncpa [#allocation4], 1

// kernel: tpu_custom_call.1
$region0: #{tpu_custom_call.1}
  #allocation0 [shape = 'u32[]', space=smem, size = 0x4, offset = 0x4, fixed_abs, tag = 'smem constant byte address 0x4 - core index']
  #allocation1 [shape = 'u32[144,128]{1,0:T(1,128)}', space=vmem, size = 0x12000, scoped, tag = 'internal scratch']
  %s0 = inlined_call_operand.vmem [shape: f32[16,2], index: 0, kind: input, shape index: {}]
  %s1 = inlined_call_operand.vmem [shape: f32[16,2], index: 1, kind: input, shape index: {}]
  %s2 = inlined_call_operand.vmem [shape: f32[16,1], index: 2, kind: input, shape index: {}]
  %s3 = inlined_call_operand.vmem [shape: f32[16,1], index: 3, kind: input, shape index: {}]
  %s4 = inlined_call_operand.vmem [shape: f32[16,1], index: 4, kind: input, shape index: {}]
  %s5 = inlined_call_operand.vmem [shape: f32[16,1], index: 5, kind: input, shape index: {}]
  %s6 = inlined_call_operand.vmem [shape: f32[16,1], index: 6, kind: input, shape index: {}]
  %s7 = inlined_call_operand.hbm [shape: f32[1,2], index: 7, kind: output, shape index: {}]
  %s8 = sld [smem:[#allocation0]]
  $region38: #{tpu_custom_call.1} parent=0
    _
  %s10 = ssub.s32 1, %s8
  %s11 = scalar_select 0, %s10, %s8
  $region1: #{tpu_custom_call.1} parent=0
    #allocation2 [shape = 'u8[512]{0}', space=vmem, size = 0x400, scoped, tag = 'output window, operand 0, single buffered']
    #allocation3 [shape = 's32[1]{0}', space=sflag, size = 0x4, scoped, tag = 'scoped memory for tpu_custom_call.1']
    %12 = vsyncpa [#allocation3], 0
    // Predicated region
    $region2: #{tpu_custom_call.1} parent=1 // pred_check
      _
    $region3: #{tpu_custom_call.1} parent=1 // pred_check_branch
      %14 = sbr.rel (0) target = $region5
    $region4: #{tpu_custom_call.1} parent=1 // pred_region
      _
    $region5: #{tpu_custom_call.1} parent=1 // pred_fallthru
      _
    // Predicated region
    $region6: #{tpu_custom_call.1} parent=1 // pred_check
      _
    $region7: #{tpu_custom_call.1} parent=1 // pred_check_branch
      %16 = sbr.rel (0) target = $region9
    $region8: #{tpu_custom_call.1} parent=1 // pred_region
      _
    $region9: #{tpu_custom_call.1} parent=1 // pred_fallthru
      _
    // Predicated region
    $region10: #{tpu_custom_call.1} parent=1 // pred_check
      _
    $region11: #{tpu_custom_call.1} parent=1 // pred_check_branch
      %18 = sbr.rel (0) target = $region13
    $region12: #{tpu_custom_call.1} parent=1 // pred_region
      _
    $region13: #{tpu_custom_call.1} parent=1 // pred_fallthru
      _
    // Predicated region
    $region14: #{tpu_custom_call.1} parent=1 // pred_check
      _
    $region15: #{tpu_custom_call.1} parent=1 // pred_check_branch
      %20 = sbr.rel (0) target = $region17
    $region16: #{tpu_custom_call.1} parent=1 // pred_region
      _
    $region17: #{tpu_custom_call.1} parent=1 // pred_fallthru
      _
    // Predicated region
    $region18: #{tpu_custom_call.1} parent=1 // pred_check
      _
    $region19: #{tpu_custom_call.1} parent=1 // pred_check_branch
      %22 = sbr.rel (0) target = $region21
    $region20: #{tpu_custom_call.1} parent=1 // pred_region
      _
    $region21: #{tpu_custom_call.1} parent=1 // pred_fallthru
      _
    // Predicated region
    $region22: #{tpu_custom_call.1} parent=1 // pred_check
      _
    $region23: #{tpu_custom_call.1} parent=1 // pred_check_branch
      %24 = sbr.rel (0) target = $region25
    $region24: #{tpu_custom_call.1} parent=1 // pred_region
      _
    $region25: #{tpu_custom_call.1} parent=1 // pred_fallthru
      _
    // Predicated region
    $region26: #{tpu_custom_call.1} parent=1 // pred_check
      _
    $region27: #{tpu_custom_call.1} parent=1 // pred_check_branch
      %26 = sbr.rel (0) target = $region29
    $region28: #{tpu_custom_call.1} parent=1 // pred_region
      _
    $region29: #{tpu_custom_call.1} parent=1 // pred_fallthru
      _
    %v27 = vld [vmem:[%s0] sm:$0xff]
    %v28 = vld [vmem:[%s0 + $0x8] sm:$0xff]
    %v29 = vld [vmem:[%s1] sm:$0xff]
    %v30 = vld [vmem:[%s1 + $0x8] sm:$0xff]
    %v31 = vrcp.pop %v29
    %v32 = vrcp.pop %v30
    %v33 = vmul.f32 %v27, %v31
    %v34 = vmul.f32 %v28, %v32
    %v35 = vlog2.pop %v33
    %v36 = vmul.f32 %v35, 0.6931472
    %v37 = vlog2.pop %v34
    %v38 = vmul.f32 %v37, 0.6931472
    %v39 = vld [vmem:[%s3] sm:$0xff]
    %v40 = vld [vmem:[%s3 + $0x8] sm:$0xff]
    %v41 = vld [vmem:[%s4] sm:$0xff]
    %v42 = vld [vmem:[%s4 + $0x8] sm:$0xff]
    %v43 = vld [vmem:[%s5] sm:$0xff]
    %v44 = vld [vmem:[%s5 + $0x8] sm:$0xff]
    %v45 = vld [vmem:[%s6] sm:$0xff]
    %v46 = vld [vmem:[%s6 + $0x8] sm:$0xff]
    %vm49 = vcmask 1040384
    %v50 = vrot.slane %v36, 7
    %v51 = vrot.slane %v38, 7
    %v52 = vsel %vm49, %v50, %v51
    %v55 = vsub.f32 %v36, %v50
    %v56 = vsub.f32 %v38, %v52
    %58 = vset.pattern.permute.xlu0 0
    %59 = vperm.xlu0 %58, %v39
    %v60 = vpop.permute.xlu0 %59
    %62 = vset.pattern.permute.xlu0 0
    %63 = vperm.xlu0 %62, %v40
    %v64 = vpop.permute.xlu0 %63
    %v65 = vrot.slane %v60, 7
    %v66 = vrot.slane %v64, 7
    %v67 = vsel %vm49, %v65, %v66
    %v70 = vmul.f32 %v55, %v65
    %v71 = vmul.f32 %v56, %v67
    %v74 = vrot.slane %v70, 7
    %v75 = vrot.slane %v71, 7
    %v76 = vsel %vm49, %v74, %v75
    %v79 = vsub.f32 %v70, %v74
    %v80 = vsub.f32 %v71, %v76
    %82 = vset.pattern.permute.xlu0 0
    %83 = vperm.xlu0 %82, %v43
    %v84 = vpop.permute.xlu0 %83
    %86 = vset.pattern.permute.xlu0 0
    %87 = vperm.xlu0 %86, %v44
    %v88 = vpop.permute.xlu0 %87
    %vm89 = vcmask 1041408
    %v90 = vrot.slane %v84, 6
    %v91 = vrot.slane %v88, 6
    %v92 = vsel %vm89, %v90, %v91
    %v95 = vmul.f32 %v79, %v90
    %v96 = vmul.f32 %v80, %v92
    %v97 = vld [vmem:[%s2] sm:$0xff]
    %v98 = vld [vmem:[%s2 + $0x8] sm:$0xff]
    %100 = vset.pattern.permute.xlu0 0
    %101 = vperm.xlu0 %100, %v97
    %v102 = vpop.permute.xlu0 %101
    %105 = vset.pattern.permute.xlu0 0
    %106 = vperm.xlu0 %105, %v98
    %v107 = vpop.permute.xlu0 %106
    %v109 = vmul.f32 %v102, %v36
    %v110 = vmul.f32 %v107, %v38
    %v111 = vmul.f32 %v109, %v36
    %v112 = vmul.f32 %v110, %v38
    %vm113 = vcmask 15360
    %v114 = vsel %vm113, %v111, 0.0
    %v115 = vsel %vm113, %v112, 0.0
    %v116 = vadd.f32 %v114, %v115
    %v117 = vrot.slane %v116, 4
    %v118 = vadd.f32 %v116, %v117
    %v119 = vrot.slane %v118, 2
    %v120 = vadd.f32 %v118, %v119
    %v121 = vrot.slane %v120, 1
    %v122 = vadd.f32 %v120, %v121
    %124 = vset.pattern.permute.xlu0 0
    %125 = vperm.xlu0 %124, %v41
    %v126 = vpop.permute.xlu0 %125
    %129 = vset.pattern.permute.xlu0 0
    %130 = vperm.xlu0 %129, %v42
    %v131 = vpop.permute.xlu0 %130
    %vm133 = vcmask 1046528
    %v134 = vrot.slane %v70, 1
    %v135 = vrot.slane %v71, 1
    %v136 = vsel %vm133, %v134, %v135
    %v139 = vmul.f32 %v126, %v136
    %v140 = vmul.f32 %v131, %v135
    %v141 = vmul.f32 %v139, %v136
    %v142 = vmul.f32 %v140, %v135
    %v143 = vsel %vm113, %v141, 0.0
    %vm144 = vcmask 14336
    %v145 = vsel %vm144, %v142, 0.0
    %v146 = vadd.f32 %v143, %v145
    %v147 = vrot.slane %v146, 4
    %v148 = vadd.f32 %v146, %v147
    %v149 = vrot.slane %v148, 2
    %v150 = vadd.f32 %v148, %v149
    %v151 = vrot.slane %v150, 1
    %v152 = vadd.f32 %v150, %v151
    %v153 = vadd.f32 %v122, %v152
    %155 = vset.pattern.permute.xlu0 0
    %156 = vperm.xlu0 %155, %v45
    %v157 = vpop.permute.xlu0 %156
    %160 = vset.pattern.permute.xlu0 0
    %161 = vperm.xlu0 %160, %v46
    %v162 = vpop.permute.xlu0 %161
    %vm166 = vcmask 1045504
    %v167 = vrot.slane %v95, 2
    %v168 = vrot.slane %v96, 2
    %v169 = vsel %vm166, %v167, %v168
    %v172 = vmul.f32 %v157, %v169
    %v173 = vmul.f32 %v162, %v168
    %v174 = vmul.f32 %v172, %v169
    %v175 = vmul.f32 %v173, %v168
    %v176 = vsel %vm113, %v174, 0.0
    %vm177 = vcmask 13312
    %v178 = vsel %vm177, %v175, 0.0
    %v179 = vadd.f32 %v176, %v178
    %v180 = vrot.slane %v179, 4
    %v181 = vadd.f32 %v179, %v180
    %v182 = vrot.slane %v181, 2
    %v183 = vadd.f32 %v181, %v182
    %v184 = vrot.slane %v183, 1
    %v185 = vadd.f32 %v183, %v184
    %v186 = vadd.f32 %v153, %v185
    %vm187 = vcmask 8192
    %188 = vst.msk [vmem:[#allocation2] sm:$0x1] %vm187, %v186
    // Predicated region
    $region30: #{tpu_custom_call.1} parent=1 // pred_check
      _
    $region31: #{tpu_custom_call.1} parent=1 // pred_check_branch
      %190 = sbr.rel (0) target = $region33
    $region32: #{tpu_custom_call.1} parent=1 // pred_region
      %s192 = ssub.s32 16, 16
      %193 = vsyncadd [#allocation3], %s192
      %s195 = sshll.u32 [#allocation2], 4
      %s196 = int_to_ptr.vmem [resolvable:$true] %s195
      %198 = dma.vmem_to_hbm [thread:$0]  %s196, 16, %s7, [#allocation3]
    $region33: #{tpu_custom_call.1} parent=1 // pred_fallthru
      _
    // Predicated region
    $region34: #{tpu_custom_call.1} parent=1 // pred_check
      _
    $region35: #{tpu_custom_call.1} parent=1 // pred_check_branch
      %200 = sbr.rel (0) target = $region37
    $region36: #{tpu_custom_call.1} parent=1 // pred_region
      %201 = dma.done [#allocation3], 16
    $region37: #{tpu_custom_call.1} parent=1 // pred_fallthru
      _
    %202 = vsyncpa [#allocation3], 1

</llo_original>
